<compile_context>
chip_gen: v7x
topology: tpu7x:2x2x1
jax: 0.10.0
libtpu: 0.0.40
codegen_flags: <defaults>
</compile_context>

<pallas_src>
import functools

import jax
import jax.numpy as jnp
from jax import lax
from jax.experimental import pallas as pl
from jax.experimental.pallas import tpu as pltpu

LANES = 128
MAX_BLOCK_ROWS = 4096   # 2 streams x 2 bufs x 4096x128x4B = 8 MiB in flight


def _cdiv(a, b):
    return -(-a // b)


def _round_up(a, b):
    return _cdiv(a, b) * b


def _num_tensorcores():
    """2 on v7x (dual TensorCore per chip), 1 elsewhere / on detection failure."""
    try:
        kind = jax.devices()[0].device_kind.lower()
    except Exception:
        return 1
    return 2 if ("v7" in kind or "7x" in kind) else 1


def _loss_stats_kernel(n_ref, pred_ref, target_ref, out_ref, *,
                       num_inner, block_rows):
    """Accumulates per-lane partial statistics into out_ref (1, 8, 128).

    Sublane rows (summed over lanes + cores on the host afterwards):
      0: sum((pred-target)^2)          over valid elements
      1: sum(rel_err^2 * low)   2: count(low)    (target <= 15000)
      3: sum(rel_err^2 * mid)   4: count(mid)    (15000 < target <= 30000)
      5: sum(rel_err^2 * high)  6: count(high)   (target > 30000)
      7: unused
    """
    c = pl.program_id(0)
    i = pl.program_id(1)

    @pl.when(i == 0)
    def _():
        out_ref[...] = jnp.zeros_like(out_ref)

    block_elems = block_rows * LANES
    blk = c * num_inner + i          # UNclamped global block index
    base = blk * block_elems         # first flat element index of this block
    n = n_ref[0]

    p = pred_ref[...].astype(jnp.float32)
    t = target_ref[...].astype(jnp.float32)

    def accumulate(sq, rel2, low, mid, high):
        # Sublane-only partial reductions; single stacked lane-dense update.
        partial = jnp.concatenate([
            jnp.sum(sq, axis=0, keepdims=True),
            jnp.sum(rel2 * low, axis=0, keepdims=True),
            jnp.sum(low, axis=0, keepdims=True),
            jnp.sum(rel2 * mid, axis=0, keepdims=True),
            jnp.sum(mid, axis=0, keepdims=True),
            jnp.sum(rel2 * high, axis=0, keepdims=True),
            jnp.sum(high, axis=0, keepdims=True),
            jnp.zeros((1, LANES), jnp.float32),
        ], axis=0)                                        # (8, 128)
        out_ref[0, :, :] += partial

    interior = base + block_elems <= n   # every element of this block is valid

    @pl.when(interior)
    def _():                             # fast path: no iota / mask / selects
        diff = p - t
        sq = diff * diff
        # approx=False: exact reciprocal (approx=True ~6e-5 rel err would show
        # up in the penalty terms); Newton refinement runs on the VPU.
        inv = pl.reciprocal(t, approx=False)
        rel2 = sq * (inv * inv)
        le15 = (t <= 15000.0).astype(jnp.float32)
        le30 = (t <= 30000.0).astype(jnp.float32)
        low = le15
        mid = le30 - le15
        high = 1.0 - le30
        accumulate(sq, rel2, low, mid, high)

    @pl.when(jnp.logical_not(interior))
    def _():                             # boundary / over-cover block: masked
        row = lax.broadcasted_iota(jnp.int32, (block_rows, LANES), 0)
        col = lax.broadcasted_iota(jnp.int32, (block_rows, LANES), 1)
        valid = (base + row * LANES + col) < n
        m = valid.astype(jnp.float32)
        # Select (not multiply-by-mask): out-of-range lanes may hold undefined
        # data (possibly NaN/Inf) from the clamped boundary DMA.
        t_safe = jnp.where(valid, t, 1.0)
        diff = jnp.where(valid, p - t, 0.0)
        sq = diff * diff
        inv = pl.reciprocal(t_safe, approx=False)
        rel2 = sq * (inv * inv)
        le15 = jnp.where(t_safe <= 15000.0, m, 0.0)
        le30 = jnp.where(t_safe <= 30000.0, m, 0.0)
        low = le15
        mid = le30 - le15
        high = m - le30
        accumulate(sq, rel2, low, mid, high)


def price_loss(pred, target, penalty_weight=0.4, *, max_block_rows=MAX_BLOCK_ROWS):
    """JAX/Pallas equivalent of the PyTorch `Loss.forward`."""
    def _prep(x):
        x = jnp.squeeze(x).reshape(-1)
        # bf16 stays bf16 over HBM (upcast in-kernel); everything else -> f32.
        if x.dtype not in (jnp.float32, jnp.bfloat16):
            x = x.astype(jnp.float32)
        return x

    pred = _prep(pred)
    target = _prep(target)
    n = pred.shape[0]

    rem = n % LANES
    if rem:
        # TODO(synk): ragged tail still pays one jnp.pad copy; a manual-DMA
        # (memory_space=pl.ANY) tail block would make this path copy-free too.
        pad = LANES - rem
        pred = jnp.pad(pred, (0, pad))
        target = jnp.pad(target, (0, pad))
    rows = _cdiv(n, LANES)
    pred2 = pred.reshape(rows, LANES)      # pure reshape (no copy) when aligned
    target2 = target.reshape(rows, LANES)

    ncores = _num_tensorcores()
    block_rows = min(max_block_rows, _round_up(_cdiv(rows, ncores), 16))
    num_inner = _cdiv(rows, ncores * block_rows)
    max_blk = (rows - 1) // block_rows     # last block holding >= 1 in-range row

    def in_map(c, i, n_ref):
        # Clamp so over-covering grid steps re-read a valid block; their
        # contribution is zeroed by the in-kernel mask (which uses the
        # UNclamped index).
        return (jnp.minimum(c * num_inner + i, max_blk), 0)

    kernel = functools.partial(_loss_stats_kernel,
                               num_inner=num_inner, block_rows=block_rows)

    partials = pl.pallas_call(
        kernel,
        out_shape=jax.ShapeDtypeStruct((ncores, 8, LANES), jnp.float32),
        grid_spec=pltpu.PrefetchScalarGridSpec(
            num_scalar_prefetch=1,
            grid=(ncores, num_inner),
            in_specs=[
                pl.BlockSpec((block_rows, LANES), in_map),
                pl.BlockSpec((block_rows, LANES), in_map),
            ],
            out_specs=pl.BlockSpec((1, 8, LANES), lambda c, i, n_ref: (c, 0, 0)),
        ),
        compiler_params=pltpu.CompilerParams(
            # TODO(synk): on v7x verify in xprof that the leading axis actually
            # shards across both TensorCores; if not, switch to pltpu.CORE_PARALLEL.
            dimension_semantics=("parallel", "arbitrary"),
            vmem_limit_bytes=32 * 1024 * 1024),
    )(jnp.array([n], dtype=jnp.int32), pred2, target2)

    stats = jnp.sum(partials, axis=(0, 2))          # (ncores, 8, 128) -> (8,)
    sq_sum = stats[0]
    low_sum, low_cnt = stats[1], stats[2]
    mid_sum, mid_cnt = stats[3], stats[4]
    high_sum, high_cnt = stats[5], stats[6]

    base_loss = sq_sum / jnp.float32(n)             # n_valid == n exactly

    def _penalty(s, cnt, scale):
        # matches: mean(square(err)) * penalty_weight * scale if len > 0 else 0
        return jnp.where(cnt > 0.0, s / jnp.maximum(cnt, 1.0), 0.0) * (penalty_weight * scale)

    return (base_loss
            + _penalty(low_sum, low_cnt, 2.8)
            + _penalty(mid_sum, mid_cnt, 1.0)
            + _penalty(high_sum, high_cnt, 0.5))


def _reference_loss(pred, target, penalty_weight=0.4):
    """Pure-JAX reference mirroring the PyTorch forward (for sanity check)."""
    pred = jnp.squeeze(pred).astype(jnp.float32)
    target = jnp.squeeze(target).astype(jnp.float32)
    base = jnp.mean((pred - target) ** 2)
    rel2 = ((pred - target) / target) ** 2

    def bucket(mask, scale):
        cnt = jnp.sum(mask.astype(jnp.float32))
        s = jnp.sum(jnp.where(mask, rel2, 0.0))
        return jnp.where(cnt > 0, s / jnp.maximum(cnt, 1.0), 0.0) * penalty_weight * scale

    low = bucket(target <= 15000.0, 2.8)
    mid = bucket((target > 15000.0) & (target <= 30000.0), 1.0)
    high = bucket(target > 30000.0, 0.5)
    return base + low + mid + high


if __name__ == "__main__":
    key = jax.random.PRNGKey(0)

    def _check(N, dtype, max_block_rows=MAX_BLOCK_ROWS, tol=1e-4):
        k1, k2 = jax.random.split(jax.random.fold_in(key, N))
        target = jax.random.uniform(k1, (N, 1), jnp.float32,
                                    minval=5000.0, maxval=50000.0)
        noise = jax.random.normal(k2, (N, 1), jnp.float32) * 2000.0
        pred = (target + noise).astype(dtype)
        target = target.astype(dtype)
        loss = jax.block_until_ready(
            price_loss(pred, target, 0.4, max_block_rows=max_block_rows))
        ref = jax.block_until_ready(
            _reference_loss(pred.astype(jnp.float32), target.astype(jnp.float32), 0.4))
        assert jnp.allclose(loss, ref, rtol=tol, atol=tol), (N, dtype, loss, ref)

    _check(256, jnp.float32)                           # lane-aligned, no pad copy
    _check(300, jnp.float32)                           # ragged tail -> masked boundary block
    _check(4133, jnp.float32, max_block_rows=16)       # multi-step grid: interior fast path + boundary
    _check(256, jnp.bfloat16, tol=1e-4)                # bf16 streamed as bf16, upcast in-kernel
    print("KERNEL_OK")
</pallas_src>

<mosaic_0001>
module attributes {stable_mosaic.version = 11 : i64} {
  func.func @_loss_stats_kernel(%arg0: i32, %arg1: i32, %arg2: memref<1xi32, #tpu.memory_space<smem>>, %arg3: memref<16x128xf32, #tpu.memory_space<vmem>>, %arg4: memref<16x128xf32, #tpu.memory_space<vmem>>, %arg5: memref<1x8x128xf32, #tpu.memory_space<vmem>>) attributes {dimension_semantics = [#tpu.dimension_semantics<parallel>, #tpu.dimension_semantics<arbitrary>], iteration_bounds = array<i64: 1, 1>, scalar_prefetch = 1 : i64, scratch_operands = 0 : i64, tpu.core_type = #tpu.core_type<tc>, window_params = [{transform_indices = @transform_0, window_bounds = array<i64: 16, 128>}, {transform_indices = @transform_1, window_bounds = array<i64: 16, 128>}, {transform_indices = @transform_2, window_bounds = array<i64: 1, 8, 128>}]} {
    %c0_i32 = arith.constant 0 : i32
    %0 = arith.cmpi eq, %arg1, %c0_i32 : i32
    %1 = arith.extui %0 : i1 to i32
    %c0_i32_0 = arith.constant 0 : i32
    %2 = arith.cmpi ne, %1, %c0_i32_0 : i32
    scf.if %2 {
      %cst = arith.constant 0.000000e+00 : f32
      %16 = vector.broadcast %cst : f32 to vector<1x8x128xf32>
      %c0_8 = arith.constant 0 : index
      %c0_9 = arith.constant 0 : index
      %c0_10 = arith.constant 0 : index
      %17 = vector.load %arg5[%c0_8, %c0_9, %c0_10] : memref<1x8x128xf32, #tpu.memory_space<vmem>>, vector<1x8x128xf32>
      tpu.vector_store %arg5[%c0_8, %c0_9, %c0_10], %16 {strides = array<i32>} : memref<1x8x128xf32, #tpu.memory_space<vmem>>, vector<1x8x128xf32>,
    } else {
    }
    %c1_i32 = arith.constant 1 : i32
    %3 = arith.muli %arg0, %c1_i32 : i32
    %4 = arith.addi %3, %arg1 : i32
    %c2048_i32 = arith.constant 2048 : i32
    %5 = arith.muli %4, %c2048_i32 : i32
    %c0 = arith.constant 0 : index
    %6 = memref.load %arg2[%c0] : memref<1xi32, #tpu.memory_space<smem>>
    %c0_1 = arith.constant 0 : index
    %c0_2 = arith.constant 0 : index
    %7 = vector.load %arg3[%c0_1, %c0_2] : memref<16x128xf32, #tpu.memory_space<vmem>>, vector<16x128xf32>
    %c0_3 = arith.constant 0 : index
    %c0_4 = arith.constant 0 : index
    %8 = vector.load %arg4[%c0_3, %c0_4] : memref<16x128xf32, #tpu.memory_space<vmem>>, vector<16x128xf32>
    %c2048_i32_5 = arith.constant 2048 : i32
    %9 = arith.addi %5, %c2048_i32_5 : i32
    %10 = arith.cmpi sle, %9, %6 : i32
    %11 = arith.extui %10 : i1 to i32
    %c0_i32_6 = arith.constant 0 : i32
    %12 = arith.cmpi ne, %11, %c0_i32_6 : i32
    scf.if %12 {
      %16 = arith.subf %7, %8 : vector<16x128xf32>
      %17 = arith.mulf %16, %16 : vector<16x128xf32>
      %18 = tpu.reciprocal %8 : vector<16x128xf32> -> vector<16x128xf32>
      %19 = arith.mulf %18, %18 : vector<16x128xf32>
      %20 = arith.mulf %17, %19 : vector<16x128xf32>
      %cst = arith.constant 1.500000e+04 : f32
      %21 = vector.broadcast %cst : f32 to vector<16x128xf32>
      %22 = arith.cmpf ole, %8, %21 : vector<16x128xf32>
      %23 = arith.extui %22 : vector<16x128xi1> to vector<16x128xi32>
      %24 = arith.sitofp %23 : vector<16x128xi32> to vector<16x128xf32>
      %cst_8 = arith.constant 3.000000e+04 : f32
      %25 = vector.broadcast %cst_8 : f32 to vector<16x128xf32>
      %26 = arith.cmpf ole, %8, %25 : vector<16x128xf32>
      %27 = arith.extui %26 : vector<16x128xi1> to vector<16x128xi32>
      %28 = arith.sitofp %27 : vector<16x128xi32> to vector<16x128xf32>
      %29 = arith.subf %28, %24 : vector<16x128xf32>
      %cst_9 = arith.constant 1.000000e+00 : f32
      %30 = vector.broadcast %cst_9 : f32 to vector<16x128xf32>
      %31 = arith.subf %30, %28 : vector<16x128xf32>
      %cst_10 = arith.constant dense<0.000000e+00> : vector<128xf32>
      %32 = vector.multi_reduction <add>, %17, %cst_10 [0] : vector<16x128xf32> to vector<128xf32>
      %33 = vector.shape_cast %32 : vector<128xf32> to vector<1x128xf32>
      %34 = arith.mulf %20, %24 : vector<16x128xf32>
      %cst_11 = arith.constant dense<0.000000e+00> : vector<128xf32>
      %35 = vector.multi_reduction <add>, %34, %cst_11 [0] : vector<16x128xf32> to vector<128xf32>
      %36 = vector.shape_cast %35 : vector<128xf32> to vector<1x128xf32>
      %cst_12 = arith.constant dense<0.000000e+00> : vector<128xf32>
      %37 = vector.multi_reduction <add>, %24, %cst_12 [0] : vector<16x128xf32> to vector<128xf32>
      %38 = vector.shape_cast %37 : vector<128xf32> to vector<1x128xf32>
      %39 = arith.mulf %20, %29 : vector<16x128xf32>
      %cst_13 = arith.constant dense<0.000000e+00> : vector<128xf32>
      %40 = vector.multi_reduction <add>, %39, %cst_13 [0] : vector<16x128xf32> to vector<128xf32>
      %41 = vector.shape_cast %40 : vector<128xf32> to vector<1x128xf32>
      %cst_14 = arith.constant dense<0.000000e+00> : vector<128xf32>
      %42 = vector.multi_reduction <add>, %29, %cst_14 [0] : vector<16x128xf32> to vector<128xf32>
      %43 = vector.shape_cast %42 : vector<128xf32> to vector<1x128xf32>
      %44 = arith.mulf %20, %31 : vector<16x128xf32>
      %cst_15 = arith.constant dense<0.000000e+00> : vector<128xf32>
      %45 = vector.multi_reduction <add>, %44, %cst_15 [0] : vector<16x128xf32> to vector<128xf32>
      %46 = vector.shape_cast %45 : vector<128xf32> to vector<1x128xf32>
      %cst_16 = arith.constant dense<0.000000e+00> : vector<128xf32>
      %47 = vector.multi_reduction <add>, %31, %cst_16 [0] : vector<16x128xf32> to vector<128xf32>
      %48 = vector.shape_cast %47 : vector<128xf32> to vector<1x128xf32>
      %cst_17 = arith.constant 0.000000e+00 : f32
      %49 = vector.broadcast %cst_17 : f32 to vector<1x128xf32>
      %50 = tpu.concatenate %33, %36, %38, %41, %43, %46, %48, %49 in 0 : vector<1x128xf32>, vector<1x128xf32>, vector<1x128xf32>, vector<1x128xf32>, vector<1x128xf32>, vector<1x128xf32>, vector<1x128xf32>, vector<1x128xf32> -> vector<8x128xf32>
      %c0_18 = arith.constant 0 : index
      %c0_19 = arith.constant 0 : index
      %c0_20 = arith.constant 0 : index
      %51 = vector.load %arg5[%c0_18, %c0_19, %c0_20] : memref<1x8x128xf32, #tpu.memory_space<vmem>>, vector<1x8x128xf32>
      %52 = vector.shape_cast %51 : vector<1x8x128xf32> to vector<8x128xf32>
      %53 = arith.addf %52, %50 : vector<8x128xf32>
      %c0_21 = arith.constant 0 : index
      %c0_22 = arith.constant 0 : index
      %c0_23 = arith.constant 0 : index
      %54 = vector.load %arg5[%c0_21, %c0_22, %c0_23] : memref<1x8x128xf32, #tpu.memory_space<vmem>>, vector<1x8x128xf32>
      %55 = vector.shape_cast %54 : vector<1x8x128xf32> to vector<8x128xf32>
      %56 = vector.shape_cast %53 : vector<8x128xf32> to vector<1x8x128xf32>
      tpu.vector_store %arg5[%c0_21, %c0_22, %c0_23], %56 {strides = array<i32>} : memref<1x8x128xf32, #tpu.memory_space<vmem>>, vector<1x8x128xf32>,
    } else {
    }
    %true = arith.constant true
    %13 = arith.xori %10, %true : i1
    %14 = arith.extui %13 : i1 to i32
    %c0_i32_7 = arith.constant 0 : i32
    %15 = arith.cmpi ne, %14, %c0_i32_7 : i32
    scf.if %15 {
      %16 = tpu.iota {dimensions = array<i32: 0>} : vector<16x128xi32>
      %17 = tpu.iota {dimensions = array<i32: 1>} : vector<16x128xi32>
      %c128_i32 = arith.constant 128 : i32
      %18 = vector.broadcast %c128_i32 : i32 to vector<16x128xi32>
      %19 = arith.muli %16, %18 : vector<16x128xi32>
      %20 = vector.broadcast %5 : i32 to vector<16x128xi32>
      %21 = arith.addi %20, %19 : vector<16x128xi32>
      %22 = arith.addi %21, %17 : vector<16x128xi32>
      %23 = vector.broadcast %6 : i32 to vector<16x128xi32>
      %24 = arith.cmpi slt, %22, %23 : vector<16x128xi32>
      %25 = arith.extui %24 : vector<16x128xi1> to vector<16x128xi32>
      %26 = arith.sitofp %25 : vector<16x128xi32> to vector<16x128xf32>
      %cst = arith.constant 1.000000e+00 : f32
      %27 = vector.broadcast %cst : f32 to vector<16x128xf32>
      %28 = arith.select %24, %8, %27 : vector<16x128xi1>, vector<16x128xf32>
      %29 = arith.subf %7, %8 : vector<16x128xf32>
      %cst_8 = arith.constant 0.000000e+00 : f32
      %30 = vector.broadcast %cst_8 : f32 to vector<16x128xf32>
      %31 = arith.select %24, %29, %30 : vector<16x128xi1>, vector<16x128xf32>
      %32 = arith.mulf %31, %31 : vector<16x128xf32>
      %33 = tpu.reciprocal %28 : vector<16x128xf32> -> vector<16x128xf32>
      %34 = arith.mulf %33, %33 : vector<16x128xf32>
      %35 = arith.mulf %32, %34 : vector<16x128xf32>
      %cst_9 = arith.constant 1.500000e+04 : f32
      %36 = vector.broadcast %cst_9 : f32 to vector<16x128xf32>
      %37 = arith.cmpf ole, %28, %36 : vector<16x128xf32>
      %cst_10 = arith.constant 0.000000e+00 : f32
      %38 = vector.broadcast %cst_10 : f32 to vector<16x128xf32>
      %39 = arith.select %37, %26, %38 : vector<16x128xi1>, vector<16x128xf32>
      %cst_11 = arith.constant 3.000000e+04 : f32
      %40 = vector.broadcast %cst_11 : f32 to vector<16x128xf32>
      %41 = arith.cmpf ole, %28, %40 : vector<16x128xf32>
      %cst_12 = arith.constant 0.000000e+00 : f32
      %42 = vector.broadcast %cst_12 : f32 to vector<16x128xf32>
      %43 = arith.select %41, %26, %42 : vector<16x128xi1>, vector<16x128xf32>
      %44 = arith.subf %43, %39 : vector<16x128xf32>
      %45 = arith.subf %26, %43 : vector<16x128xf32>
      %cst_13 = arith.constant dense<0.000000e+00> : vector<128xf32>
      %46 = vector.multi_reduction <add>, %32, %cst_13 [0] : vector<16x128xf32> to vector<128xf32>
      %47 = vector.shape_cast %46 : vector<128xf32> to vector<1x128xf32>
      %48 = arith.mulf %35, %39 : vector<16x128xf32>
      %cst_14 = arith.constant dense<0.000000e+00> : vector<128xf32>
      %49 = vector.multi_reduction <add>, %48, %cst_14 [0] : vector<16x128xf32> to vector<128xf32>
      %50 = vector.shape_cast %49 : vector<128xf32> to vector<1x128xf32>
      %cst_15 = arith.constant dense<0.000000e+00> : vector<128xf32>
      %51 = vector.multi_reduction <add>, %39, %cst_15 [0] : vector<16x128xf32> to vector<128xf32>
      %52 = vector.shape_cast %51 : vector<128xf32> to vector<1x128xf32>
      %53 = arith.mulf %35, %44 : vector<16x128xf32>
      %cst_16 = arith.constant dense<0.000000e+00> : vector<128xf32>
      %54 = vector.multi_reduction <add>, %53, %cst_16 [0] : vector<16x128xf32> to vector<128xf32>
      %55 = vector.shape_cast %54 : vector<128xf32> to vector<1x128xf32>
      %cst_17 = arith.constant dense<0.000000e+00> : vector<128xf32>
      %56 = vector.multi_reduction <add>, %44, %cst_17 [0] : vector<16x128xf32> to vector<128xf32>
      %57 = vector.shape_cast %56 : vector<128xf32> to vector<1x128xf32>
      %58 = arith.mulf %35, %45 : vector<16x128xf32>
      %cst_18 = arith.constant dense<0.000000e+00> : vector<128xf32>
      %59 = vector.multi_reduction <add>, %58, %cst_18 [0] : vector<16x128xf32> to vector<128xf32>
      %60 = vector.shape_cast %59 : vector<128xf32> to vector<1x128xf32>
      %cst_19 = arith.constant dense<0.000000e+00> : vector<128xf32>
      %61 = vector.multi_reduction <add>, %45, %cst_19 [0] : vector<16x128xf32> to vector<128xf32>
      %62 = vector.shape_cast %61 : vector<128xf32> to vector<1x128xf32>
      %cst_20 = arith.constant 0.000000e+00 : f32
      %63 = vector.broadcast %cst_20 : f32 to vector<1x128xf32>
      %64 = tpu.concatenate %47, %50, %52, %55, %57, %60, %62, %63 in 0 : vector<1x128xf32>, vector<1x128xf32>, vector<1x128xf32>, vector<1x128xf32>, vector<1x128xf32>, vector<1x128xf32>, vector<1x128xf32>, vector<1x128xf32> -> vector<8x128xf32>
      %c0_21 = arith.constant 0 : index
      %c0_22 = arith.constant 0 : index
      %c0_23 = arith.constant 0 : index
      %65 = vector.load %arg5[%c0_21, %c0_22, %c0_23] : memref<1x8x128xf32, #tpu.memory_space<vmem>>, vector<1x8x128xf32>
      %66 = vector.shape_cast %65 : vector<1x8x128xf32> to vector<8x128xf32>
      %67 = arith.addf %66, %64 : vector<8x128xf32>
      %c0_24 = arith.constant 0 : index
      %c0_25 = arith.constant 0 : index
      %c0_26 = arith.constant 0 : index
      %68 = vector.load %arg5[%c0_24, %c0_25, %c0_26] : memref<1x8x128xf32, #tpu.memory_space<vmem>>, vector<1x8x128xf32>
      %69 = vector.shape_cast %68 : vector<1x8x128xf32> to vector<8x128xf32>
      %70 = vector.shape_cast %67 : vector<8x128xf32> to vector<1x8x128xf32>
      tpu.vector_store %arg5[%c0_24, %c0_25, %c0_26], %70 {strides = array<i32>} : memref<1x8x128xf32, #tpu.memory_space<vmem>>, vector<1x8x128xf32>,
    } else {
    }
    return
  }
  func.func @transform_0(%arg0: i32, %arg1: i32, %arg2: memref<1xi32, #tpu.memory_space<smem>>) -> (i32, i32) {
    %c1_i32 = arith.constant 1 : i32
    %0 = arith.muli %arg0, %c1_i32 : i32
    %1 = arith.addi %0, %arg1 : i32
    %c0_i32 = arith.constant 0 : i32
    %2 = arith.minsi %1, %c0_i32 : i32
    %c0_i32_0 = arith.constant 0 : i32
    %c0_i32_1 = arith.constant 0 : i32
    return %2, %c0_i32_0 : i32, i32
  }
  func.func @transform_1(%arg0: i32, %arg1: i32, %arg2: memref<1xi32, #tpu.memory_space<smem>>) -> (i32, i32) {
    %c1_i32 = arith.constant 1 : i32
    %0 = arith.muli %arg0, %c1_i32 : i32
    %1 = arith.addi %0, %arg1 : i32
    %c0_i32 = arith.constant 0 : i32
    %2 = arith.minsi %1, %c0_i32 : i32
    %c0_i32_0 = arith.constant 0 : i32
    %c0_i32_1 = arith.constant 0 : i32
    return %2, %c0_i32_0 : i32, i32
  }
  func.func @transform_2(%arg0: i32, %arg1: i32, %arg2: memref<1xi32, #tpu.memory_space<smem>>) -> (i32, i32, i32) {
    %c0_i32 = arith.constant 0 : i32
    %c0_i32_0 = arith.constant 0 : i32
    %c0_i32_1 = arith.constant 0 : i32
    return %arg0, %c0_i32, %c0_i32_0 : i32, i32, i32
  }
}

</mosaic_0001>

<llo_original>
// kernel: tpu_custom_call.1
$region0: #{tpu_custom_call.1}
  #allocation0 [shape = 'u32[]', space=smem, size = 0x4, offset = 0x4, fixed_abs, tag = 'smem constant byte address 0x4 - core index']
  #allocation1 [shape = 'u32[144,128]{1,0:T(1,128)}', space=vmem, size = 0x12000, scoped, tag = 'internal scratch']
  #allocation2 [shape = 's32[1]{0}', space=sflag, size = 0x4, scoped, tag = 'scoped memory for tpu_custom_call.1']
  #allocation3 [shape = 's32[1]{0:T(128)S(6)}', space=smem, size = 0x200, scoped, tag = 'prefetched SMEM operand 0']
  %s0 = inlined_call_operand.<no memory space> [shape: s32[1], index: 0, kind: input, shape index: {}]
  %s1 = inlined_call_operand.vmem [shape: f32[2,128], index: 1, kind: input, shape index: {}]
  %s2 = inlined_call_operand.vmem [shape: f32[2,128], index: 2, kind: input, shape index: {}]
  %s3 = inlined_call_operand.hbm [shape: f32[1,8,128], index: 3, kind: output, shape index: {}]
  %s4 = sld [smem:[#allocation0]]
  $region30: #{tpu_custom_call.1} parent=0
    _
  %s6 = ssub.s32 1, %s4
  %s7 = scalar_select 0, %s6, %s4
  %8 = sst [smem:[#allocation3]] %s0
  $region1: #{tpu_custom_call.1} parent=0
    #allocation4 [shape = 'u8[4096]{0}', space=vmem, size = 0x1000, scoped, tag = 'output window, operand 0, single buffered']
    #allocation5 [shape = 's32[1]{0}', space=sflag, size = 0x4, scoped, tag = 'scoped memory for tpu_custom_call.1']
    %9 = vsyncpa [#allocation5], 0
    // Predicated region
    $region2: #{tpu_custom_call.1} parent=1 // pred_check
      _
    $region3: #{tpu_custom_call.1} parent=1 // pred_check_branch
      %11 = sbr.rel (0) target = $region5
    $region4: #{tpu_custom_call.1} parent=1 // pred_region
      %s12 = sadd.s32 0, 0
      %p13 = scmp.lt.s32.totalorder %s12, 0
      %s14 = scalar_select %p13, %s12, 0
      %s15 = smul.u32 8, %s14
      %s16 = ssub.s32 1, %s15
      %s17 = smul.u32 32, %s16
      %p18 = scmp.lt.s32.totalorder %s15, 0
      %s19 = scalar_select %p18, %s15, 0
      %s20 = smul.addr %s19, 2
      %s21 = scalar_lea.vmem %s1, %s20
      %s22 = sadd.s32 0, 0
      %p23 = scmp.lt.s32.totalorder %s22, 0
      %s24 = scalar_select %p23, %s22, 0
      %s25 = smul.u32 8, %s24
      %s26 = ssub.s32 1, %s25
      %s27 = smul.u32 32, %s26
    $region5: #{tpu_custom_call.1} parent=1 // pred_fallthru
      _
    // Predicated region
    $region6: #{tpu_custom_call.1} parent=1 // pred_check
      _
    $region7: #{tpu_custom_call.1} parent=1 // pred_check_branch
      %29 = sbr.rel (0) target = $region9
    $region8: #{tpu_custom_call.1} parent=1 // pred_region
      %s30 = sadd.s32 0, 0
      %p31 = scmp.lt.s32.totalorder %s30, 0
      %s32 = scalar_select %p31, %s30, 0
      %s33 = smul.u32 8, %s32
      %s34 = ssub.s32 1, %s33
      %s35 = smul.u32 32, %s34
      %p36 = scmp.lt.s32.totalorder %s33, 0
      %s37 = scalar_select %p36, %s33, 0
      %s38 = smul.addr %s37, 2
      %s39 = scalar_lea.vmem %s2, %s38
      %s40 = sadd.s32 0, 0
      %p41 = scmp.lt.s32.totalorder %s40, 0
      %s42 = scalar_select %p41, %s40, 0
      %s43 = smul.u32 8, %s42
      %s44 = ssub.s32 1, %s43
      %s45 = smul.u32 32, %s44
    $region9: #{tpu_custom_call.1} parent=1 // pred_fallthru
      _
    %s46 = sadd.s32 0, 0
    %p47 = scmp.lt.s32.totalorder %s46, 0
    %s48 = scalar_select %p47, %s46, 0
    %s49 = smul.u32 8, %s48
    %s50 = ssub.s32 1, %s49
    %s51 = smul.u32 32, %s50
    %p52 = scmp.lt.s32.totalorder %s49, 0
    %s53 = scalar_select %p52, %s49, 0
    %s54 = smul.addr %s53, 2
    %s55 = scalar_lea.vmem %s1, %s54
    %s56 = sadd.s32 0, 0
    %p57 = scmp.lt.s32.totalorder %s56, 0
    %s58 = scalar_select %p57, %s56, 0
    %s59 = smul.u32 8, %s58
    %s60 = ssub.s32 1, %s59
    %s61 = smul.u32 32, %s60
    %p62 = scmp.lt.s32.totalorder %s59, 0
    %s63 = scalar_select %p62, %s59, 0
    %s64 = smul.addr %s63, 2
    %s65 = scalar_lea.vmem %s2, %s64
    %s66 = sadd.s32 0, 0
    %p67 = scmp.lt.s32.totalorder %s66, 0
    %s68 = scalar_select %p67, %s66, 0
    %s69 = smul.u32 8, %s68
    %s70 = ssub.s32 1, %s69
    %s71 = smul.u32 32, %s70
    %p72 = scmp.lt.s32.totalorder %s69, 0
    %s73 = scalar_select %p72, %s69, 0
    %s74 = smul.addr %s73, 2
    %s75 = scalar_lea.vmem %s1, %s74
    %s76 = sadd.s32 0, 0
    %p77 = scmp.lt.s32.totalorder %s76, 0
    %s78 = scalar_select %p77, %s76, 0
    %s79 = smul.u32 8, %s78
    %s80 = ssub.s32 1, %s79
    %s81 = smul.u32 32, %s80
    %s82 = sadd.s32 0, 0
    %p83 = scmp.lt.s32.totalorder %s82, 0
    %s84 = scalar_select %p83, %s82, 0
    %s85 = smul.u32 8, %s84
    %s86 = ssub.s32 1, %s85
    %s87 = smul.u32 32, %s86
    %p88 = scmp.lt.s32.totalorder %s85, 0
    %s89 = scalar_select %p88, %s85, 0
    %s90 = smul.addr %s89, 2
    %s91 = scalar_lea.vmem %s2, %s90
    %s92 = sadd.s32 0, 0
    %p93 = scmp.lt.s32.totalorder %s92, 0
    %s94 = scalar_select %p93, %s92, 0
    %s95 = smul.u32 8, %s94
    %s96 = ssub.s32 1, %s95
    %s97 = smul.u32 32, %s96
    %p98 = scmp.eq.s32.totalorder 0, 0
    // Predicated region
    $region10: #{tpu_custom_call.1} parent=1 // pred_check
      %p99 = pneg %p98
    $region11: #{tpu_custom_call.1} parent=1 // pred_check_branch
      %101 = sbr.rel (%p99) target = $region13
    $region12: #{tpu_custom_call.1} parent=1 // pred_region
      %102 = vst [vmem:[#allocation4] sm:$0xff] 0.0
    $region13: #{tpu_custom_call.1} parent=1 // pred_fallthru
      _
    %s103 = sadd.s32 0, 0
    %s104 = smul.u32 %s103, 2048
    %s105 = sld [smem:[#allocation3]]
    %v106 = vld [vmem:[%s75] sm:$0xff]
    %v107 = vld [vmem:[%s75 + $0x8] sm:$0xff]
    %v108 = vld [vmem:[%s91] sm:$0xff]
    %v109 = vld [vmem:[%s91 + $0x8] sm:$0xff]
    %s110 = sadd.s32 %s104, 2048
    %p111 = scmp.le.s32.totalorder %s110, %s105
    // Predicated region
    $region14: #{tpu_custom_call.1} parent=1 // pred_check
      %p112 = pneg %p111
    $region15: #{tpu_custom_call.1} parent=1 // pred_check_branch
      %114 = sbr.rel (%p112) target = $region17
    $region16: #{tpu_custom_call.1} parent=1 // pred_region
      %v115 = vsub.f32 %v106, %v108
      %v116 = vsub.f32 %v107, %v109
      %v117 = vmul.f32 %v115, %v115
      %v118 = vmul.f32 %v116, %v116
      %v119 = vrcp.pop %v108
      %v120 = vrcp.pop %v109
      %v121 = vmul.f32 %v119, %v119
      %v122 = vmul.f32 %v120, %v120
      %v123 = vmul.f32 %v117, %v121
      %v124 = vmul.f32 %v118, %v122
      %vm125 = vcmp.le.f32.partialorder %v108, 15000.0
      %vm126 = vcmp.le.f32.partialorder %v109, 15000.0
      %v127 = vsel %vm125, 1, 0
      %v128 = vsel %vm126, 1, 0
      %v129 = vcvt.s32.f32 %v127
      %v130 = vcvt.s32.f32 %v128
      %vm131 = vcmp.le.f32.partialorder %v108, 30000.0
      %vm132 = vcmp.le.f32.partialorder %v109, 30000.0
      %v133 = vsel %vm131, 1, 0
      %v134 = vsel %vm132, 1, 0
      %v135 = vcvt.s32.f32 %v133
      %v136 = vcvt.s32.f32 %v134
      %v137 = vsub.f32 %v135, %v129
      %v138 = vsub.f32 %v136, %v130
      %v139 = vsub.f32 1.0, %v135
      %v140 = vsub.f32 1.0, %v136
      %v141 = vadd.f32 %v117, %v118
      %v142 = vrot.slane %v141, 4
      %v143 = vadd.f32 %v141, %v142
      %v144 = vrot.slane %v143, 2
      %v145 = vadd.f32 %v143, %v144
      %v146 = vrot.slane %v145, 1
      %v147 = vadd.f32 %v145, %v146
      %v148 = vmul.f32 %v123, %v129
      %v149 = vmul.f32 %v124, %v130
      %v150 = vadd.f32 %v148, %v149
      %v151 = vrot.slane %v150, 4
      %v152 = vadd.f32 %v150, %v151
      %v153 = vrot.slane %v152, 2
      %v154 = vadd.f32 %v152, %v153
      %v155 = vrot.slane %v154, 1
      %v156 = vadd.f32 %v154, %v155
      %v157 = vadd.f32 %v129, %v130
      %v158 = vrot.slane %v157, 4
      %v159 = vadd.f32 %v157, %v158
      %v160 = vrot.slane %v159, 2
      %v161 = vadd.f32 %v159, %v160
      %v162 = vrot.slane %v161, 1
      %v163 = vadd.f32 %v161, %v162
      %v164 = vmul.f32 %v123, %v137
      %v165 = vmul.f32 %v124, %v138
      %v166 = vadd.f32 %v164, %v165
      %v167 = vrot.slane %v166, 4
      %v168 = vadd.f32 %v166, %v167
      %v169 = vrot.slane %v168, 2
      %v170 = vadd.f32 %v168, %v169
      %v171 = vrot.slane %v170, 1
      %v172 = vadd.f32 %v170, %v171
      %v173 = vadd.f32 %v137, %v138
      %v174 = vrot.slane %v173, 4
      %v175 = vadd.f32 %v173, %v174
      %v176 = vrot.slane %v175, 2
      %v177 = vadd.f32 %v175, %v176
      %v178 = vrot.slane %v177, 1
      %v179 = vadd.f32 %v177, %v178
      %v180 = vmul.f32 %v123, %v139
      %v181 = vmul.f32 %v124, %v140
      %v182 = vadd.f32 %v180, %v181
      %v183 = vrot.slane %v182, 4
      %v184 = vadd.f32 %v182, %v183
      %v185 = vrot.slane %v184, 2
      %v186 = vadd.f32 %v184, %v185
      %v187 = vrot.slane %v186, 1
      %v188 = vadd.f32 %v186, %v187
      %v189 = vadd.f32 %v139, %v140
      %v190 = vrot.slane %v189, 4
      %v191 = vadd.f32 %v189, %v190
      %v192 = vrot.slane %v191, 2
      %v193 = vadd.f32 %v191, %v192
      %v194 = vrot.slane %v193, 1
      %v195 = vadd.f32 %v193, %v194
      %vm196 = vcmask 1040384
      %v197 = vsel %vm196, %v147, %v156
      %vm198 = vcmask 1041408
      %v199 = vsel %vm198, %v197, %v163
      %vm200 = vcmask 1042432
      %v201 = vsel %vm200, %v199, %v172
      %vm202 = vcmask 1043456
      %v203 = vsel %vm202, %v201, %v179
      %vm204 = vcmask 1044480
      %v205 = vsel %vm204, %v203, %v188
      %vm206 = vcmask 1045504
      %v207 = vsel %vm206, %v205, %v195
      %vm208 = vcmask 1046528
      %v209 = vsel %vm208, %v207, 0.0
      %v210 = vld [vmem:[#allocation4] sm:$0xff]
      %v211 = vadd.f32 %v210, %v209
      %212 = vst [vmem:[#allocation4] sm:$0xff] %v211
    $region17: #{tpu_custom_call.1} parent=1 // pred_fallthru
      _
    %p213 = scmp.gt.s32.totalorder %s110, %s105
    // Predicated region
    $region18: #{tpu_custom_call.1} parent=1 // pred_check
      %p214 = pneg %p213
    $region19: #{tpu_custom_call.1} parent=1 // pred_check_branch
      %216 = sbr.rel (%p214) target = $region21
    $region20: #{tpu_custom_call.1} parent=1 // pred_region
      %v217 = vlaneseq
      %v218 = vshrl.u32 %v217, 7
      %v219 = vadd.s32 %v218, 8
      %v220 = vlaneseq
      %v221 = vand.u32 %v220, 127
      %v222 = vmul.u32 %v218, 128
      %v223 = vmul.u32 %v219, 128
      %v224 = vstv %s104
      %v225 = vadd.s32 %v224, %v222
      %v226 = vadd.s32 %v224, %v223
      %v227 = vadd.s32 %v225, %v221
      %v228 = vadd.s32 %v226, %v221
      %v229 = vstv %s105
      %vm230 = vcmp.lt.s32.totalorder %v227, %v229
      %vm231 = vcmp.lt.s32.totalorder %v228, %v229
      %v232 = vsel %vm230, 1, 0
      %v233 = vsel %vm231, 1, 0
      %v234 = vcvt.s32.f32 %v232
      %v235 = vcvt.s32.f32 %v233
      %v236 = vsel %vm230, %v108, 1.0
      %v237 = vsel %vm231, %v109, 1.0
      %v238 = vsub.f32 %v106, %v108
      %v239 = vsub.f32 %v107, %v109
      %v240 = vsel %vm230, %v238, 0.0
      %v241 = vsel %vm231, %v239, 0.0
      %v242 = vmul.f32 %v240, %v240
      %v243 = vmul.f32 %v241, %v241
      %v244 = vrcp.pop %v236
      %v245 = vrcp.pop %v237
      %v246 = vmul.f32 %v244, %v244
      %v247 = vmul.f32 %v245, %v245
      %v248 = vmul.f32 %v242, %v246
      %v249 = vmul.f32 %v243, %v247
      %vm250 = vcmp.le.f32.partialorder %v236, 15000.0
      %vm251 = vcmp.le.f32.partialorder %v237, 15000.0
      %v252 = vsel %vm250, %v234, 0.0
      %v253 = vsel %vm251, %v235, 0.0
      %vm254 = vcmp.le.f32.partialorder %v236, 30000.0
      %vm255 = vcmp.le.f32.partialorder %v237, 30000.0
      %v256 = vsel %vm254, %v234, 0.0
      %v257 = vsel %vm255, %v235, 0.0
      %v258 = vsub.f32 %v256, %v252
      %v259 = vsub.f32 %v257, %v253
      %v260 = vsub.f32 %v234, %v256
      %v261 = vsub.f32 %v235, %v257
      %v262 = vadd.f32 %v242, %v243
      %v263 = vrot.slane %v262, 4
      %v264 = vadd.f32 %v262, %v263
      %v265 = vrot.slane %v264, 2
      %v266 = vadd.f32 %v264, %v265
      %v267 = vrot.slane %v266, 1
      %v268 = vadd.f32 %v266, %v267
      %v269 = vmul.f32 %v248, %v252
      %v270 = vmul.f32 %v249, %v253
      %v271 = vadd.f32 %v269, %v270
      %v272 = vrot.slane %v271, 4
      %v273 = vadd.f32 %v271, %v272
      %v274 = vrot.slane %v273, 2
      %v275 = vadd.f32 %v273, %v274
      %v276 = vrot.slane %v275, 1
      %v277 = vadd.f32 %v275, %v276
      %v278 = vadd.f32 %v252, %v253
      %v279 = vrot.slane %v278, 4
      %v280 = vadd.f32 %v278, %v279
      %v281 = vrot.slane %v280, 2
      %v282 = vadd.f32 %v280, %v281
      %v283 = vrot.slane %v282, 1
      %v284 = vadd.f32 %v282, %v283
      %v285 = vmul.f32 %v248, %v258
      %v286 = vmul.f32 %v249, %v259
      %v287 = vadd.f32 %v285, %v286
      %v288 = vrot.slane %v287, 4
      %v289 = vadd.f32 %v287, %v288
      %v290 = vrot.slane %v289, 2
      %v291 = vadd.f32 %v289, %v290
      %v292 = vrot.slane %v291, 1
      %v293 = vadd.f32 %v291, %v292
      %v294 = vadd.f32 %v258, %v259
      %v295 = vrot.slane %v294, 4
      %v296 = vadd.f32 %v294, %v295
      %v297 = vrot.slane %v296, 2
      %v298 = vadd.f32 %v296, %v297
      %v299 = vrot.slane %v298, 1
      %v300 = vadd.f32 %v298, %v299
      %v301 = vmul.f32 %v248, %v260
      %v302 = vmul.f32 %v249, %v261
      %v303 = vadd.f32 %v301, %v302
      %v304 = vrot.slane %v303, 4
      %v305 = vadd.f32 %v303, %v304
      %v306 = vrot.slane %v305, 2
      %v307 = vadd.f32 %v305, %v306
      %v308 = vrot.slane %v307, 1
      %v309 = vadd.f32 %v307, %v308
      %v310 = vadd.f32 %v260, %v261
      %v311 = vrot.slane %v310, 4
      %v312 = vadd.f32 %v310, %v311
      %v313 = vrot.slane %v312, 2
      %v314 = vadd.f32 %v312, %v313
      %v315 = vrot.slane %v314, 1
      %v316 = vadd.f32 %v314, %v315
      %vm317 = vcmask 1040384
      %v318 = vsel %vm317, %v268, %v277
      %vm319 = vcmask 1041408
      %v320 = vsel %vm319, %v318, %v284
      %vm321 = vcmask 1042432
      %v322 = vsel %vm321, %v320, %v293
      %vm323 = vcmask 1043456
      %v324 = vsel %vm323, %v322, %v300
      %vm325 = vcmask 1044480
      %v326 = vsel %vm325, %v324, %v309
      %vm327 = vcmask 1045504
      %v328 = vsel %vm327, %v326, %v316
      %vm329 = vcmask 1046528
      %v330 = vsel %vm329, %v328, 0.0
      %v331 = vld [vmem:[#allocation4] sm:$0xff]
      %v332 = vadd.f32 %v331, %v330
      %333 = vst [vmem:[#allocation4] sm:$0xff] %v332
    $region21: #{tpu_custom_call.1} parent=1 // pred_fallthru
      _
    // Predicated region
    $region22: #{tpu_custom_call.1} parent=1 // pred_check
      _
    $region23: #{tpu_custom_call.1} parent=1 // pred_check_branch
      %335 = sbr.rel (0) target = $region25
    $region24: #{tpu_custom_call.1} parent=1 // pred_region
      %s337 = ssub.s32 128, 128
      %338 = vsyncadd [#allocation5], %s337
      %s340 = sshll.u32 [#allocation4], 4
      %s341 = int_to_ptr.vmem [resolvable:$true] %s340
      %343 = dma.vmem_to_hbm [thread:$0]  %s341, 128, %s3, [#allocation5]
    $region25: #{tpu_custom_call.1} parent=1 // pred_fallthru
      _
    // Predicated region
    $region26: #{tpu_custom_call.1} parent=1 // pred_check
      _
    $region27: #{tpu_custom_call.1} parent=1 // pred_check_branch
      %345 = sbr.rel (0) target = $region29
    $region28: #{tpu_custom_call.1} parent=1 // pred_region
      %346 = dma.done [#allocation5], 128
    $region29: #{tpu_custom_call.1} parent=1 // pred_fallthru
      _
    %347 = vsyncpa [#allocation5], 1

</llo_original>
